<compile_context>
chip_gen: v6e
topology: v6e:2x2x1
jax: 0.10.0
libtpu: 0.0.40
codegen_flags: <defaults>
</compile_context>

<pallas_src>
import jax
import jax.numpy as jnp
from jax import lax
from jax.experimental import pallas as pl


_EPS = 1e-8


def _sum_all_2d(x):
    # Full reduction of a 2-D tile, kept 2-D at every step -> shape (1, 1).
    return jnp.sum(jnp.sum(x, axis=1, keepdims=True), axis=0, keepdims=True)


def _cdd_kernel(src_yt_ref, tgt_yt_ref, src_x_ref, tgt_x_ref,
                center_ref, num_ref, intra_ref, inter_ref):
    src_yt = src_yt_ref[...]          # (C, ns) class-major source labels
    tgt_yt = tgt_yt_ref[...]          # (C, nt) class-major target labels
    src_x = src_x_ref[...]            # (ns, F)
    tgt_x = tgt_x_ref[...]            # (nt, F)
    src_center = center_ref[...]      # (C, F)  buffered class centroids
    src_num = num_ref[...]            # (C, 1)  buffered per-class counts

    n_cls = src_yt.shape[0]

    # Class-weighted feature sums on the MXU.
    batch_src = jnp.dot(src_yt, src_x, preferred_element_type=jnp.float32)   # (C, F)
    batch_tgt = jnp.dot(tgt_yt, tgt_x, preferred_element_type=jnp.float32)   # (C, F)

    # Class-conditional means (source folds in the buffered centroid mass).
    buffer_src = src_center * src_num
    total_num = src_num + jnp.sum(src_yt, axis=1, keepdims=True) + _EPS      # (C, 1)
    mean_src = (buffer_src + batch_src) / total_num                          # (C, F)
    batch_prob = jnp.sum(tgt_yt, axis=1, keepdims=True) + _EPS               # (C, 1)
    mean_tgt = batch_tgt / batch_prob                                        # (C, F)

    # ---- intra: only the diagonal of cdist(mean_src, mean_tgt) is used ----
    diff = mean_src - mean_tgt
    intra_d = jnp.sqrt(jnp.sum(diff * diff, axis=1, keepdims=True))          # (C, 1)
    intra_ref[...] = _sum_all_2d(intra_d) * (1.0 / n_cls)

    # ---- inter: full cdist(mean_src, mean_src) via one Gram matmul --------
    gram = lax.dot_general(mean_src, mean_src, (((1,), (1,)), ((), ())),
                           preferred_element_type=jnp.float32)               # (C, C)
    eye = (lax.broadcasted_iota(jnp.int32, (n_cls, n_cls), 0)
           == lax.broadcasted_iota(jnp.int32, (n_cls, n_cls), 1))
    gdiag = jnp.where(eye, gram, 0.0)
    sq_col = jnp.sum(gdiag, axis=1, keepdims=True)                           # (C, 1) ||m_i||^2
    sq_row = jnp.sum(gdiag, axis=0, keepdims=True)                           # (1, C) ||m_j||^2
    d2 = jnp.maximum(sq_col + sq_row - 2.0 * gram, 0.0)
    inter_ref[...] = _sum_all_2d(jnp.sqrt(d2)) * (1.0 / (n_cls * n_cls))


def cdd_linear_forward(src_x, tgt_x, src_y, tgt_y, *, n_cls,
                       src_center=None, src_num=None):
    """Returns (intra_loss, inter_loss) scalars, matching CDDLinear.forward(mask=None)."""
    src_x = jnp.asarray(src_x, jnp.float32)
    tgt_x = jnp.asarray(tgt_x, jnp.float32)
    src_y = jnp.asarray(src_y)
    tgt_y = jnp.asarray(tgt_y)
    if src_y.ndim == 1:                       # hard labels -> one-hot (as in the module)
        src_y = jnp.eye(n_cls, dtype=jnp.float32)[src_y]
    if tgt_y.ndim == 1:
        tgt_y = jnp.eye(n_cls, dtype=jnp.float32)[tgt_y]
    src_y = src_y.astype(jnp.float32)
    tgt_y = tgt_y.astype(jnp.float32)

    n_feat = src_x.shape[1]
    if src_center is None:                    # K == 0 (or fresh queue) -> zero centroids
        src_center = jnp.zeros((n_cls, n_feat), jnp.float32)
    if src_num is None:
        src_num = jnp.zeros((n_cls, 1), jnp.float32)
    src_center = jnp.asarray(src_center, jnp.float32)
    src_num = jnp.asarray(src_num, jnp.float32).reshape(n_cls, 1)

    intra11, inter11 = pl.pallas_call(
        _cdd_kernel,
        out_shape=(jax.ShapeDtypeStruct((1, 1), jnp.float32),
                   jax.ShapeDtypeStruct((1, 1), jnp.float32)),
    )(jnp.transpose(src_y), jnp.transpose(tgt_y), src_x, tgt_x, src_center, src_num)
    return intra11[0, 0], inter11[0, 0]


# ----------------------------- pure-JAX reference -----------------------------
def _cdd_linear_reference(src_x, tgt_x, src_y, tgt_y, src_center, src_num):
    batch_src = src_y.T @ src_x
    batch_tgt = tgt_y.T @ tgt_x
    total_num = src_num + jnp.sum(src_y.T, axis=1, keepdims=True) + _EPS
    mean_src = (src_center * src_num + batch_src) / total_num
    batch_prob = jnp.sum(tgt_y.T, axis=1, keepdims=True) + _EPS
    mean_tgt = batch_tgt / batch_prob

    def cdist(a, b):
        d2 = jnp.sum((a[:, None, :] - b[None, :, :]) ** 2, axis=-1)
        return jnp.sqrt(jnp.maximum(d2, 0.0))

    intra = jnp.mean(jnp.diag(cdist(mean_src, mean_tgt)))
    inter = jnp.mean(cdist(mean_src, mean_src))
    return intra, inter


def _close(a, b, tol=5e-3):
    a, b = float(a), float(b)
    return abs(a - b) <= tol * max(1.0, abs(b))


if __name__ == "__main__":
    n_cls, n_feat = 4, 32
    ns = nt = 8

    key = jax.random.PRNGKey(0)
    k1, k2, k3, k4, k5, k6 = jax.random.split(key, 6)
    src_x = jax.random.normal(k1, (ns, n_feat), dtype=jnp.float32)
    tgt_x = jax.random.normal(k2, (nt, n_feat), dtype=jnp.float32)
    src_y = jax.random.randint(k3, (ns,), 0, n_cls)                       # 1-D hard labels
    tgt_y = jax.nn.softmax(jax.random.normal(k4, (nt, n_cls)), axis=-1)   # soft labels

    # --- fresh-queue / K == 0 path (zero buffered centroids) ---
    intra, inter = cdd_linear_forward(src_x, tgt_x, src_y, tgt_y, n_cls=n_cls)
    jax.block_until_ready((intra, inter))

    src_y_oh = jnp.eye(n_cls, dtype=jnp.float32)[src_y]
    ref_intra, ref_inter = _cdd_linear_reference(
        src_x, tgt_x, src_y_oh, tgt_y,
        jnp.zeros((n_cls, n_feat), jnp.float32), jnp.zeros((n_cls, 1), jnp.float32))
    assert _close(intra, ref_intra), (float(intra), float(ref_intra))
    assert _close(inter, ref_inter), (float(inter), float(ref_inter))

    # --- populated-queue path (nonzero buffered centroids / counts) ---
    src_center = jax.random.normal(k5, (n_cls, n_feat), dtype=jnp.float32)
    src_num = jax.random.uniform(k6, (n_cls, 1), minval=0.0, maxval=5.0)
    intra2, inter2 = cdd_linear_forward(src_x, tgt_x, src_y, tgt_y, n_cls=n_cls,
                                        src_center=src_center, src_num=src_num)
    jax.block_until_ready((intra2, inter2))
    ref_intra2, ref_inter2 = _cdd_linear_reference(src_x, tgt_x, src_y_oh, tgt_y,
                                                   src_center, src_num)
    assert _close(intra2, ref_intra2), (float(intra2), float(ref_intra2))
    assert _close(inter2, ref_inter2), (float(inter2), float(ref_inter2))

    print("KERNEL_OK")
</pallas_src>

<mosaic_0001>
module attributes {stable_mosaic.version = 11 : i64} {
  func.func @_cdd_kernel(%arg0: memref<4x8xf32, #tpu.memory_space<vmem>>, %arg1: memref<4x8xf32, #tpu.memory_space<vmem>>, %arg2: memref<8x32xf32, #tpu.memory_space<vmem>>, %arg3: memref<8x32xf32, #tpu.memory_space<vmem>>, %arg4: memref<4x32xf32, #tpu.memory_space<vmem>>, %arg5: memref<4x1xf32, #tpu.memory_space<vmem>>, %arg6: memref<1x1xf32, #tpu.memory_space<vmem>>, %arg7: memref<1x1xf32, #tpu.memory_space<vmem>>) attributes {dimension_semantics = [], scalar_prefetch = 0 : i64, scratch_operands = 0 : i64, tpu.core_type = #tpu.core_type<tc>} {
    %c0 = arith.constant 0 : index
    %c0_0 = arith.constant 0 : index
    %0 = vector.load %arg0[%c0, %c0_0] : memref<4x8xf32, #tpu.memory_space<vmem>>, vector<4x8xf32>
    %c0_1 = arith.constant 0 : index
    %c0_2 = arith.constant 0 : index
    %1 = vector.load %arg1[%c0_1, %c0_2] : memref<4x8xf32, #tpu.memory_space<vmem>>, vector<4x8xf32>
    %c0_3 = arith.constant 0 : index
    %c0_4 = arith.constant 0 : index
    %2 = vector.load %arg2[%c0_3, %c0_4] : memref<8x32xf32, #tpu.memory_space<vmem>>, vector<8x32xf32>
    %c0_5 = arith.constant 0 : index
    %c0_6 = arith.constant 0 : index
    %3 = vector.load %arg3[%c0_5, %c0_6] : memref<8x32xf32, #tpu.memory_space<vmem>>, vector<8x32xf32>
    %c0_7 = arith.constant 0 : index
    %c0_8 = arith.constant 0 : index
    %4 = vector.load %arg4[%c0_7, %c0_8] : memref<4x32xf32, #tpu.memory_space<vmem>>, vector<4x32xf32>
    %c0_9 = arith.constant 0 : index
    %c0_10 = arith.constant 0 : index
    %5 = vector.load %arg5[%c0_9, %c0_10] : memref<4x1xf32, #tpu.memory_space<vmem>>, vector<4x1xf32>
    %cst = arith.constant dense<0.000000e+00> : vector<4x32xf32>
    %6 = tpu.matmul %0, %2, %cst {dimension_numbers = #tpu.dot_dimension_numbers<[1], [0], [0], [1], [0, 0, 1, 1], [], []>} : vector<4x8xf32>, vector<8x32xf32>, vector<4x32xf32> -> vector<4x32xf32>
    %cst_11 = arith.constant dense<0.000000e+00> : vector<4x32xf32>
    %7 = tpu.matmul %1, %3, %cst_11 {dimension_numbers = #tpu.dot_dimension_numbers<[1], [0], [0], [1], [0, 0, 1, 1], [], []>} : vector<4x8xf32>, vector<8x32xf32>, vector<4x32xf32> -> vector<4x32xf32>
    %8 = vector.broadcast %5 : vector<4x1xf32> to vector<4x32xf32>
    %9 = arith.mulf %4, %8 : vector<4x32xf32>
    %cst_12 = arith.constant dense<0.000000e+00> : vector<4xf32>
    %10 = vector.multi_reduction <add>, %0, %cst_12 [1] : vector<4x8xf32> to vector<4xf32>
    %11 = vector.shape_cast %10 : vector<4xf32> to vector<4x1xf32>
    %12 = arith.addf %5, %11 : vector<4x1xf32>
    %cst_13 = arith.constant 9.99999993E-9 : f32
    %13 = vector.broadcast %cst_13 : f32 to vector<4x1xf32>
    %14 = arith.addf %12, %13 : vector<4x1xf32>
    %15 = arith.addf %9, %6 : vector<4x32xf32>
    %16 = vector.broadcast %14 : vector<4x1xf32> to vector<4x32xf32>
    %17 = arith.divf %15, %16 : vector<4x32xf32>
    %cst_14 = arith.constant dense<0.000000e+00> : vector<4xf32>
    %18 = vector.multi_reduction <add>, %1, %cst_14 [1] : vector<4x8xf32> to vector<4xf32>
    %19 = vector.shape_cast %18 : vector<4xf32> to vector<4x1xf32>
    %cst_15 = arith.constant 9.99999993E-9 : f32
    %20 = vector.broadcast %cst_15 : f32 to vector<4x1xf32>
    %21 = arith.addf %19, %20 : vector<4x1xf32>
    %22 = vector.broadcast %21 : vector<4x1xf32> to vector<4x32xf32>
    %23 = arith.divf %7, %22 : vector<4x32xf32>
    %24 = arith.subf %17, %23 : vector<4x32xf32>
    %25 = arith.mulf %24, %24 : vector<4x32xf32>
    %cst_16 = arith.constant dense<0.000000e+00> : vector<4xf32>
    %26 = vector.multi_reduction <add>, %25, %cst_16 [1] : vector<4x32xf32> to vector<4xf32>
    %27 = vector.shape_cast %26 : vector<4xf32> to vector<4x1xf32>
    %28 = math.sqrt %27 : vector<4x1xf32>
    %cst_17 = arith.constant dense<0.000000e+00> : vector<4xf32>
    %29 = vector.multi_reduction <add>, %28, %cst_17 [1] : vector<4x1xf32> to vector<4xf32>
    %30 = vector.shape_cast %29 : vector<4xf32> to vector<4x1xf32>
    %cst_18 = arith.constant dense<0.000000e+00> : vector<1xf32>
    %31 = vector.multi_reduction <add>, %30, %cst_18 [0] : vector<4x1xf32> to vector<1xf32>
    %32 = vector.shape_cast %31 : vector<1xf32> to vector<1x1xf32>
    %cst_19 = arith.constant 2.500000e-01 : f32
    %33 = vector.broadcast %cst_19 : f32 to vector<1x1xf32>
    %34 = arith.mulf %32, %33 : vector<1x1xf32>
    %c0_20 = arith.constant 0 : index
    %c0_21 = arith.constant 0 : index
    %35 = vector.load %arg6[%c0_20, %c0_21] : memref<1x1xf32, #tpu.memory_space<vmem>>, vector<1x1xf32>
    tpu.vector_store %arg6[%c0_20, %c0_21], %34 {strides = array<i32>} : memref<1x1xf32, #tpu.memory_space<vmem>>, vector<1x1xf32>,
    %cst_22 = arith.constant dense<0.000000e+00> : vector<4x4xf32>
    %36 = tpu.matmul %17, %17, %cst_22 {dimension_numbers = #tpu.dot_dimension_numbers<[1], [1], [0], [0], [0, 0, 1, 0], [], []>} : vector<4x32xf32>, vector<4x32xf32>, vector<4x4xf32> -> vector<4x4xf32>
    %37 = tpu.iota {dimensions = array<i32: 0>} : vector<4x4xi32>
    %38 = tpu.iota {dimensions = array<i32: 1>} : vector<4x4xi32>
    %39 = arith.cmpi eq, %37, %38 : vector<4x4xi32>
    %cst_23 = arith.constant 0.000000e+00 : f32
    %40 = vector.broadcast %cst_23 : f32 to vector<4x4xf32>
    %41 = arith.select %39, %36, %40 : vector<4x4xi1>, vector<4x4xf32>
    %cst_24 = arith.constant dense<0.000000e+00> : vector<4xf32>
    %42 = vector.multi_reduction <add>, %41, %cst_24 [1] : vector<4x4xf32> to vector<4xf32>
    %43 = vector.shape_cast %42 : vector<4xf32> to vector<4x1xf32>
    %cst_25 = arith.constant dense<0.000000e+00> : vector<4xf32>
    %44 = vector.multi_reduction <add>, %41, %cst_25 [0] : vector<4x4xf32> to vector<4xf32>
    %45 = vector.shape_cast %44 : vector<4xf32> to vector<1x4xf32>
    %46 = vector.broadcast %43 : vector<4x1xf32> to vector<4x4xf32>
    %47 = vector.broadcast %45 : vector<1x4xf32> to vector<4x4xf32>
    %48 = arith.addf %46, %47 : vector<4x4xf32>
    %cst_26 = arith.constant 2.000000e+00 : f32
    %49 = vector.broadcast %cst_26 : f32 to vector<4x4xf32>
    %50 = arith.mulf %49, %36 : vector<4x4xf32>
    %51 = arith.subf %48, %50 : vector<4x4xf32>
    %cst_27 = arith.constant 0.000000e+00 : f32
    %52 = vector.broadcast %cst_27 : f32 to vector<4x4xf32>
    %53 = arith.maximumf %51, %52 : vector<4x4xf32>
    %54 = math.sqrt %53 : vector<4x4xf32>
    %cst_28 = arith.constant dense<0.000000e+00> : vector<4xf32>
    %55 = vector.multi_reduction <add>, %54, %cst_28 [1] : vector<4x4xf32> to vector<4xf32>
    %56 = vector.shape_cast %55 : vector<4xf32> to vector<4x1xf32>
    %cst_29 = arith.constant dense<0.000000e+00> : vector<1xf32>
    %57 = vector.multi_reduction <add>, %56, %cst_29 [0] : vector<4x1xf32> to vector<1xf32>
    %58 = vector.shape_cast %57 : vector<1xf32> to vector<1x1xf32>
    %cst_30 = arith.constant 6.250000e-02 : f32
    %59 = vector.broadcast %cst_30 : f32 to vector<1x1xf32>
    %60 = arith.mulf %58, %59 : vector<1x1xf32>
    %c0_31 = arith.constant 0 : index
    %c0_32 = arith.constant 0 : index
    %61 = vector.load %arg7[%c0_31, %c0_32] : memref<1x1xf32, #tpu.memory_space<vmem>>, vector<1x1xf32>
    tpu.vector_store %arg7[%c0_31, %c0_32], %60 {strides = array<i32>} : memref<1x1xf32, #tpu.memory_space<vmem>>, vector<1x1xf32>,
    return
  }
}

</mosaic_0001>

<llo_original>
// kernel: tpu_custom_call.1
$region0: #{tpu_custom_call.1}
  #allocation0 [shape = 'u32[]', space=smem, size = 0x4, offset = 0x4, fixed_abs, tag = 'smem constant byte address 0x4 - core index']
  #allocation1 [shape = 'u32[144,128]{1,0:T(1,128)}', space=vmem, size = 0x12000, scoped, tag = 'internal scratch']
  %s0 = inlined_call_operand.hbm [shape: f32[4,8], index: 0, kind: input, shape index: {}]
  %s1 = inlined_call_operand.hbm [shape: f32[4,8], index: 1, kind: input, shape index: {}]
  %s2 = inlined_call_operand.vmem [shape: f32[8,32], index: 2, kind: input, shape index: {}]
  %s3 = inlined_call_operand.hbm [shape: f32[8,32], index: 3, kind: input, shape index: {}]
  %s4 = inlined_call_operand.vmem [shape: f32[4,32], index: 4, kind: input, shape index: {}]
  %s5 = inlined_call_operand.vmem [shape: f32[4,1], index: 5, kind: input, shape index: {}]
  %s6 = inlined_call_operand.hbm [shape: f32[1,1], index: 6, kind: output, shape index: {0}]
  %s7 = inlined_call_operand.hbm [shape: f32[1,1], index: 7, kind: output, shape index: {1}]
  %8 = xla_tuple %s6, %s7
  %s9 = sld [smem:[#allocation0]]
  $region54: #{tpu_custom_call.1} parent=0
    _
  %s11 = ssub.s32 1, %s9
  %s12 = scalar_select 0, %s11, %s9
  $region1: #{tpu_custom_call.1} parent=0
    #allocation2 [shape = 'u8[2048]{0}', space=vmem, size = 0x800, scoped, tag = 'input window, operand 0, single buffered']
    #allocation3 [shape = 's32[1]{0}', space=sflag, size = 0x4, scoped, tag = 'scoped memory for tpu_custom_call.1']
    #allocation4 [shape = 's32[1]{0}', space=sflag, size = 0x4, scoped, tag = 'scoped memory for tpu_custom_call.1']
    #allocation5 [shape = 'u8[2048]{0}', space=vmem, size = 0x800, scoped, tag = 'input window, operand 1, single buffered']
    #allocation6 [shape = 's32[1]{0}', space=sflag, size = 0x4, scoped, tag = 'scoped memory for tpu_custom_call.1']
    #allocation7 [shape = 'u8[4096]{0}', space=vmem, size = 0x1000, scoped, tag = 'input window, operand 3, single buffered']
    #allocation8 [shape = 'u8[512]{0}', space=vmem, size = 0x400, scoped, tag = 'output window, operand 0, single buffered']
    #allocation9 [shape = 'u8[512]{0}', space=vmem, size = 0x400, scoped, tag = 'output window, operand 1, single buffered']
    #allocation10 [shape = 's32[1]{0}', space=sflag, size = 0x4, scoped, tag = 'scoped memory for tpu_custom_call.1']
    %13 = vsyncpa [#allocation3], 0
    %14 = vsyncpa [#allocation6], 0
    %15 = vsyncpa [#allocation4], 0
    %16 = vsyncpa [#allocation10], 0
    // Predicated region
    $region2: #{tpu_custom_call.1} parent=1 // pred_check
      _
    $region3: #{tpu_custom_call.1} parent=1 // pred_check_branch
      %18 = sbr.rel (0) target = $region5
    $region4: #{tpu_custom_call.1} parent=1 // pred_region
      %s20 = ssub.s32 64, 64
      %21 = vsyncadd [#allocation3], %s20
      %s23 = sshll.u32 [#allocation2], 4
      %s24 = int_to_ptr.vmem [resolvable:$true] %s23
      %26 = dma.hbm_to_vmem [thread:$0]  %s0, 64, %s24, [#allocation3]
    $region5: #{tpu_custom_call.1} parent=1 // pred_fallthru
      _
    // Predicated region
    $region6: #{tpu_custom_call.1} parent=1 // pred_check
      _
    $region7: #{tpu_custom_call.1} parent=1 // pred_check_branch
      %28 = sbr.rel (0) target = $region9
    $region8: #{tpu_custom_call.1} parent=1 // pred_region
      %s30 = ssub.s32 64, 64
      %31 = vsyncadd [#allocation6], %s30
      %s33 = sshll.u32 [#allocation5], 4
      %s34 = int_to_ptr.vmem [resolvable:$true] %s33
      %36 = dma.hbm_to_vmem [thread:$0]  %s1, 64, %s34, [#allocation6]
    $region9: #{tpu_custom_call.1} parent=1 // pred_fallthru
      _
    // Predicated region
    $region10: #{tpu_custom_call.1} parent=1 // pred_check
      _
    $region11: #{tpu_custom_call.1} parent=1 // pred_check_branch
      %38 = sbr.rel (0) target = $region13
    $region12: #{tpu_custom_call.1} parent=1 // pred_region
      _
    $region13: #{tpu_custom_call.1} parent=1 // pred_fallthru
      _
    // Predicated region
    $region14: #{tpu_custom_call.1} parent=1 // pred_check
      _
    $region15: #{tpu_custom_call.1} parent=1 // pred_check_branch
      %40 = sbr.rel (0) target = $region17
    $region16: #{tpu_custom_call.1} parent=1 // pred_region
      %s42 = ssub.s32 128, 128
      %43 = vsyncadd [#allocation6], %s42
      %s45 = sshll.u32 [#allocation7], 4
      %s46 = int_to_ptr.vmem [resolvable:$true] %s45
      %48 = dma.hbm_to_vmem [thread:$0]  %s3, 128, %s46, [#allocation6]
    $region17: #{tpu_custom_call.1} parent=1 // pred_fallthru
      _
    // Predicated region
    $region18: #{tpu_custom_call.1} parent=1 // pred_check
      _
    $region19: #{tpu_custom_call.1} parent=1 // pred_check_branch
      %50 = sbr.rel (0) target = $region21
    $region20: #{tpu_custom_call.1} parent=1 // pred_region
      _
    $region21: #{tpu_custom_call.1} parent=1 // pred_fallthru
      _
    // Predicated region
    $region22: #{tpu_custom_call.1} parent=1 // pred_check
      _
    $region23: #{tpu_custom_call.1} parent=1 // pred_check_branch
      %52 = sbr.rel (0) target = $region25
    $region24: #{tpu_custom_call.1} parent=1 // pred_region
      _
    $region25: #{tpu_custom_call.1} parent=1 // pred_fallthru
      _
    // Predicated region
    $region26: #{tpu_custom_call.1} parent=1 // pred_check
      _
    $region27: #{tpu_custom_call.1} parent=1 // pred_check_branch
      %54 = sbr.rel (0) target = $region29
    $region28: #{tpu_custom_call.1} parent=1 // pred_region
      %55 = dma.done [#allocation3], 64
    $region29: #{tpu_custom_call.1} parent=1 // pred_fallthru
      _
    // Predicated region
    $region30: #{tpu_custom_call.1} parent=1 // pred_check
      _
    $region31: #{tpu_custom_call.1} parent=1 // pred_check_branch
      %57 = sbr.rel (0) target = $region33
    $region32: #{tpu_custom_call.1} parent=1 // pred_region
      %58 = dma.done [#allocation6], 64
    $region33: #{tpu_custom_call.1} parent=1 // pred_fallthru
      _
    // Predicated region
    $region34: #{tpu_custom_call.1} parent=1 // pred_check
      _
    $region35: #{tpu_custom_call.1} parent=1 // pred_check_branch
      %60 = sbr.rel (0) target = $region37
    $region36: #{tpu_custom_call.1} parent=1 // pred_region
      %61 = dma.done [#allocation6], 128
    $region37: #{tpu_custom_call.1} parent=1 // pred_fallthru
      _
    %v62 = vld [vmem:[#allocation2] sm:$0xf]
    %v63 = vld [vmem:[#allocation5] sm:$0xf]
    %v64 = vld [vmem:[%s2] sm:$0xff]
    %v65 = vld [vmem:[#allocation7] sm:$0xff]
    %v66 = vld [vmem:[%s4] sm:$0xf]
    %v67 = vld [vmem:[%s5] sm:$0xf]
    %vm68 = vcmask 64512
    %v70 = vsel %vm68, %v62, 0
    %72 = vmatprep.subr.mxu0 0.0
    %73 = vmatpush1.msra.mxu0 0.0
    %74 = vmatprep.subr.mxu0 0.0
    %75 = vmatpush1.msra.mxu0 0.0
    %76 = vmatprep.subr.mxu0 0.0
    %77 = vmatpush1.msra.mxu0 0.0
    %78 = vmatprep.subr.mxu0 0.0
    %79 = vmatpush1.msra.mxu0 0.0
    %80 = vmatprep.subr.mxu0 0.0
    %81 = vmatpush1.msra.mxu0 0.0
    %82 = vmatprep.subr.mxu0 0.0
    %83 = vmatpush1.msra.mxu0 0.0
    %84 = vmatprep.subr.mxu0 0.0
    %85 = vmatpush1.msra.mxu0 0.0
    %86 = vmatprep.subr.mxu0 0.0
    %87 = vmatpush1.msra.mxu0 0.0
    %88 = vmatprep.subr.mxu0 0.0
    %89 = vmatpush1.msra.mxu0 0.0
    %90 = vmatprep.subr.mxu0 0.0
    %91 = vmatpush1.msra.mxu0 0.0
    %92 = vmatprep.subr.mxu0 0.0
    %93 = vmatpush1.msra.mxu0 0.0
    %94 = vmatprep.subr.mxu0 0.0
    %95 = vmatpush1.msra.mxu0 0.0
    %96 = vmatprep.subr.mxu0 0.0
    %97 = vmatpush1.msra.mxu0 0.0
    %98 = vmatprep.subr.mxu0 0.0
    %99 = vmatpush1.msra.mxu0 0.0
    %100 = vmatprep.subr.mxu0 0.0
    %101 = vmatpush1.msra.mxu0 0.0
    %102 = vmatprep.subr.mxu0 0.0
    %103 = vmatpush1.msra.mxu0 %v64
    %104 = vmatprep.subr.mxu0 0.0
    %105 = vmatpush2.msra.mxu0 0.0
    %106 = vmatprep.subr.mxu0 0.0
    %107 = vmatpush2.msra.mxu0 0.0
    %108 = vmatprep.subr.mxu0 0.0
    %109 = vmatpush2.msra.mxu0 0.0
    %110 = vmatprep.subr.mxu0 0.0
    %111 = vmatpush2.msra.mxu0 0.0
    %112 = vmatprep.subr.mxu0 0.0
    %113 = vmatpush2.msra.mxu0 0.0
    %114 = vmatprep.subr.mxu0 0.0
    %115 = vmatpush2.msra.mxu0 0.0
    %116 = vmatprep.subr.mxu0 0.0
    %117 = vmatpush2.msra.mxu0 0.0
    %118 = vmatprep.subr.mxu0 0.0
    %119 = vmatpush2.msra.mxu0 0.0
    %120 = vmatprep.subr.mxu0 0.0
    %121 = vmatpush2.msra.mxu0 0.0
    %122 = vmatprep.subr.mxu0 0.0
    %123 = vmatpush2.msra.mxu0 0.0
    %124 = vmatprep.subr.mxu0 0.0
    %125 = vmatpush2.msra.mxu0 0.0
    %126 = vmatprep.subr.mxu0 0.0
    %127 = vmatpush2.msra.mxu0 0.0
    %128 = vmatprep.subr.mxu0 0.0
    %129 = vmatpush2.msra.mxu0 0.0
    %130 = vmatprep.subr.mxu0 0.0
    %131 = vmatpush2.msra.mxu0 0.0
    %132 = vmatprep.subr.mxu0 0.0
    %133 = vmatpush2.msra.mxu0 0.0
    %134 = vmatprep.subr.mxu0 0.0
    %135 = vmatpush2.msra.mxu0 0.0
    %136 = vmatprep.mubr.f32.mxu0 0.0
    %137 = vmatmul.mubr.f32.gmra.mxu0 %v70
    %v138 = vpop.f32.mrf.mxu0
    %v139 = vadd.f32 0.0, %v138
    %v140 = vpop.f32.mrf.mxu0
    %141 = vdwg.mxu0
    %v143 = vsel %vm68, %v63, 0
    %145 = vmatprep.subr.mxu0 0.0
    %146 = vmatpush1.msra.mxu0 0.0
    %147 = vmatprep.subr.mxu0 0.0
    %148 = vmatpush1.msra.mxu0 0.0
    %149 = vmatprep.subr.mxu0 0.0
    %150 = vmatpush1.msra.mxu0 0.0
    %151 = vmatprep.subr.mxu0 0.0
    %152 = vmatpush1.msra.mxu0 0.0
    %153 = vmatprep.subr.mxu0 0.0
    %154 = vmatpush1.msra.mxu0 0.0
    %155 = vmatprep.subr.mxu0 0.0
    %156 = vmatpush1.msra.mxu0 0.0
    %157 = vmatprep.subr.mxu0 0.0
    %158 = vmatpush1.msra.mxu0 0.0
    %159 = vmatprep.subr.mxu0 0.0
    %160 = vmatpush1.msra.mxu0 0.0
    %161 = vmatprep.subr.mxu0 0.0
    %162 = vmatpush1.msra.mxu0 0.0
    %163 = vmatprep.subr.mxu0 0.0
    %164 = vmatpush1.msra.mxu0 0.0
    %165 = vmatprep.subr.mxu0 0.0
    %166 = vmatpush1.msra.mxu0 0.0
    %167 = vmatprep.subr.mxu0 0.0
    %168 = vmatpush1.msra.mxu0 0.0
    %169 = vmatprep.subr.mxu0 0.0
    %170 = vmatpush1.msra.mxu0 0.0
    %171 = vmatprep.subr.mxu0 0.0
    %172 = vmatpush1.msra.mxu0 0.0
    %173 = vmatprep.subr.mxu0 0.0
    %174 = vmatpush1.msra.mxu0 0.0
    %175 = vmatprep.subr.mxu0 0.0
    %176 = vmatpush1.msra.mxu0 %v65
    %177 = vmatprep.subr.mxu0 0.0
    %178 = vmatpush2.msra.mxu0 0.0
    %179 = vmatprep.subr.mxu0 0.0
    %180 = vmatpush2.msra.mxu0 0.0
    %181 = vmatprep.subr.mxu0 0.0
    %182 = vmatpush2.msra.mxu0 0.0
    %183 = vmatprep.subr.mxu0 0.0
    %184 = vmatpush2.msra.mxu0 0.0
    %185 = vmatprep.subr.mxu0 0.0
    %186 = vmatpush2.msra.mxu0 0.0
    %187 = vmatprep.subr.mxu0 0.0
    %188 = vmatpush2.msra.mxu0 0.0
    %189 = vmatprep.subr.mxu0 0.0
    %190 = vmatpush2.msra.mxu0 0.0
    %191 = vmatprep.subr.mxu0 0.0
    %192 = vmatpush2.msra.mxu0 0.0
    %193 = vmatprep.subr.mxu0 0.0
    %194 = vmatpush2.msra.mxu0 0.0
    %195 = vmatprep.subr.mxu0 0.0
    %196 = vmatpush2.msra.mxu0 0.0
    %197 = vmatprep.subr.mxu0 0.0
    %198 = vmatpush2.msra.mxu0 0.0
    %199 = vmatprep.subr.mxu0 0.0
    %200 = vmatpush2.msra.mxu0 0.0
    %201 = vmatprep.subr.mxu0 0.0
    %202 = vmatpush2.msra.mxu0 0.0
    %203 = vmatprep.subr.mxu0 0.0
    %204 = vmatpush2.msra.mxu0 0.0
    %205 = vmatprep.subr.mxu0 0.0
    %206 = vmatpush2.msra.mxu0 0.0
    %207 = vmatprep.subr.mxu0 0.0
    %208 = vmatpush2.msra.mxu0 0.0
    %209 = vmatprep.mubr.f32.mxu0 0.0
    %210 = vmatmul.mubr.f32.gmra.mxu0 %v143
    %v211 = vpop.f32.mrf.mxu0
    %v212 = vadd.f32 0.0, %v211
    %v213 = vpop.f32.mrf.mxu0
    %214 = vdwg.mxu0
    %216 = vset.pattern.permute.xlu0 0
    %217 = vperm.xlu0 %216, %v67
    %v218 = vpop.permute.xlu0 %217
    %v220 = vmul.f32 %v66, %v218
    %vm221 = vcmask 60416
    %v222 = vsel %vm221, %v62, 0.0
    %223 = vadd.xlane.f32.xlu0 %v222
    %v224 = vpop.xlane.xlu0 %223
    %v225 = vadd.f32 %v67, %v224
    %v226 = vadd.f32 %v225, 1e-08
    %v227 = vadd.f32 %v220, %v139
    %229 = vset.pattern.permute.xlu0 0
    %230 = vperm.xlu0 %229, %v226
    %v231 = vpop.permute.xlu0 %230
    %v233 = vrcp.pop %v231
    %v234 = vmul.f32 %v227, %v233
    %v235 = vsel %vm221, %v63, 0.0
    %236 = vadd.xlane.f32.xlu0 %v235
    %v237 = vpop.xlane.xlu0 %236
    %v238 = vadd.f32 %v237, 1e-08
    %v239 = vrcp.pop %v238
    %v240 = vmul.f32 %v212, %v239
    %v241 = vsub.f32 %v234, %v240
    %v242 = vmul.f32 %v241, %v241
    %vm243 = vcmask 257024
    %v244 = vsel %vm243, %v242, 0.0
    %245 = vadd.xlane.f32.xlu0 %v244
    %v246 = vpop.xlane.xlu0 %245
    %v247 = vrsqrt.pop %v246
    %v248 = vmul.f32 %v246, %v247
    %vm249 = vcmp.eq.f32.partialorder %v246, inf
    %v250 = vsel %vm249, %v246, %v248
    %vm251 = vcmp.eq.f32.partialorder %v246, 0.0
    %v252 = vand.u32 %v246, 2147483648
    %v253 = vsel %vm251, %v252, %v250
    %v254 = vadd.f32 %v253, 0.0
    %vm255 = vcmask 1043456
    %v256 = vsel %vm255, %v254, 0.0
    %v257 = vrot.slane %v256, 4
    %v258 = vadd.f32 %v256, %v257
    %v259 = vrot.slane %v258, 2
    %v260 = vadd.f32 %v258, %v259
    %v261 = vrot.slane %v260, 1
    %v262 = vadd.f32 %v260, %v261
    %v263 = vmul.f32 %v262, 0.25
    %vm264 = vcmask 0
    %265 = vst.msk [vmem:[#allocation8] sm:$0x1] %vm264, %v263
    %vm266 = vcmask 261120
    %v268 = vsel %vm266, %v234, 0
    %270 = vmatprep.subr.mxu0 0.0
    %271 = vmatpush1.xpose.msra.mxu0 0.0
    %272 = vmatprep.subr.mxu0 0.0
    %273 = vmatpush1.xpose.msra.mxu0 0.0
    %274 = vmatprep.subr.mxu0 0.0
    %275 = vmatpush1.xpose.msra.mxu0 0.0
    %276 = vmatprep.subr.mxu0 0.0
    %277 = vmatpush1.xpose.msra.mxu0 0.0
    %278 = vmatprep.subr.mxu0 0.0
    %279 = vmatpush1.xpose.msra.mxu0 0.0
    %280 = vmatprep.subr.mxu0 0.0
    %281 = vmatpush1.xpose.msra.mxu0 0.0
    %282 = vmatprep.subr.mxu0 0.0
    %283 = vmatpush1.xpose.msra.mxu0 0.0
    %284 = vmatprep.subr.mxu0 0.0
    %285 = vmatpush1.xpose.msra.mxu0 0.0
    %286 = vmatprep.subr.mxu0 0.0
    %287 = vmatpush1.xpose.msra.mxu0 0.0
    %288 = vmatprep.subr.mxu0 0.0
    %289 = vmatpush1.xpose.msra.mxu0 0.0
    %290 = vmatprep.subr.mxu0 0.0
    %291 = vmatpush1.xpose.msra.mxu0 0.0
    %292 = vmatprep.subr.mxu0 0.0
    %293 = vmatpush1.xpose.msra.mxu0 0.0
    %294 = vmatprep.subr.mxu0 0.0
    %295 = vmatpush1.xpose.msra.mxu0 0.0
    %296 = vmatprep.subr.mxu0 0.0
    %297 = vmatpush1.xpose.msra.mxu0 0.0
    %298 = vmatprep.subr.mxu0 0.0
    %299 = vmatpush1.xpose.msra.mxu0 0.0
    %300 = vmatprep.subr.mxu0 0.0
    %301 = vmatpush1.xpose.msra.mxu0 %v268
    %302 = vmatprep.subr.mxu0 0.0
    %303 = vmatpush2.xpose.msra.mxu0 0.0
    %304 = vmatprep.subr.mxu0 0.0
    %305 = vmatpush2.xpose.msra.mxu0 0.0
    %306 = vmatprep.subr.mxu0 0.0
    %307 = vmatpush2.xpose.msra.mxu0 0.0
    %308 = vmatprep.subr.mxu0 0.0
    %309 = vmatpush2.xpose.msra.mxu0 0.0
    %310 = vmatprep.subr.mxu0 0.0
    %311 = vmatpush2.xpose.msra.mxu0 0.0
    %312 = vmatprep.subr.mxu0 0.0
    %313 = vmatpush2.xpose.msra.mxu0 0.0
    %314 = vmatprep.subr.mxu0 0.0
    %315 = vmatpush2.xpose.msra.mxu0 0.0
    %316 = vmatprep.subr.mxu0 0.0
    %317 = vmatpush2.xpose.msra.mxu0 0.0
    %318 = vmatprep.subr.mxu0 0.0
    %319 = vmatpush2.xpose.msra.mxu0 0.0
    %320 = vmatprep.subr.mxu0 0.0
    %321 = vmatpush2.xpose.msra.mxu0 0.0
    %322 = vmatprep.subr.mxu0 0.0
    %323 = vmatpush2.xpose.msra.mxu0 0.0
    %324 = vmatprep.subr.mxu0 0.0
    %325 = vmatpush2.xpose.msra.mxu0 0.0
    %326 = vmatprep.subr.mxu0 0.0
    %327 = vmatpush2.xpose.msra.mxu0 0.0
    %328 = vmatprep.subr.mxu0 0.0
    %329 = vmatpush2.xpose.msra.mxu0 0.0
    %330 = vmatprep.subr.mxu0 0.0
    %331 = vmatpush2.xpose.msra.mxu0 0.0
    %332 = vmatprep.subr.mxu0 0.0
    %333 = vmatpush2.xpose.msra.mxu0 0.0
    %334 = vmatprep.mubr.f32.mxu0 0.0
    %335 = vmatmul.mubr.f32.gmra.mxu0 %v268
    %v336 = vpop.f32.mrf.mxu0
    %v337 = vadd.f32 0.0, %v336
    %v338 = vpop.f32.mrf.mxu0
    %339 = vdwg.mxu0
    %v340 = vlaneseq
    %v341 = vshrl.u32 %v340, 7
    %v342 = vlaneseq
    %v343 = vand.u32 %v342, 127
    %vm344 = vcmp.eq.s32.totalorder %v341, %v343
    %v345 = vsel %vm344, %v337, 0.0
    %vm346 = vcmask 27648
    %v347 = vsel %vm346, %v345, 0.0
    %348 = vadd.xlane.f32.xlu0 %v347
    %v349 = vpop.xlane.xlu0 %348
    %v350 = vrot.slane %v347, 4
    %v351 = vadd.f32 %v347, %v350
    %v352 = vrot.slane %v351, 2
    %v353 = vadd.f32 %v351, %v352
    %v354 = vrot.slane %v353, 1
    %v355 = vadd.f32 %v353, %v354
    %v356 = vadd.f32 %v349, %v355
    %v357 = vmul.f32 %v337, 2.0
    %v358 = vsub.f32 %v356, %v357
    %v359 = vmax.f32 %v358, 0.0
    %v360 = vrsqrt.pop %v359
    %v361 = vmul.f32 %v359, %v360
    %vm362 = vcmp.eq.f32.partialorder %v359, inf
    %v363 = vsel %vm362, %v359, %v361
    %vm364 = vcmp.eq.f32.partialorder %v359, 0.0
    %v365 = vand.u32 %v359, 2147483648
    %v366 = vsel %vm364, %v365, %v363
    %v367 = vsel %vm346, %v366, 0.0
    %368 = vadd.xlane.f32.xlu0 %v367
    %v369 = vpop.xlane.xlu0 %368
    %v370 = vsel %vm255, %v369, 0.0
    %v371 = vrot.slane %v370, 4
    %v372 = vadd.f32 %v370, %v371
    %v373 = vrot.slane %v372, 2
    %v374 = vadd.f32 %v372, %v373
    %v375 = vrot.slane %v374, 1
    %v376 = vadd.f32 %v374, %v375
    %v377 = vmul.f32 %v376, 0.0625
    %378 = vst.msk [vmem:[#allocation9] sm:$0x1] %vm264, %v377
    // Predicated region
    $region38: #{tpu_custom_call.1} parent=1 // pred_check
      _
    $region39: #{tpu_custom_call.1} parent=1 // pred_check_branch
      %380 = sbr.rel (0) target = $region41
    $region40: #{tpu_custom_call.1} parent=1 // pred_region
      %s382 = ssub.s32 16, 16
      %383 = vsyncadd [#allocation4], %s382
      %s385 = sshll.u32 [#allocation8], 4
      %s386 = int_to_ptr.vmem [resolvable:$true] %s385
      %388 = dma.vmem_to_hbm [thread:$0]  %s386, 16, %s6, [#allocation4]
    $region41: #{tpu_custom_call.1} parent=1 // pred_fallthru
      _
    // Predicated region
    $region42: #{tpu_custom_call.1} parent=1 // pred_check
      _
    $region43: #{tpu_custom_call.1} parent=1 // pred_check_branch
      %390 = sbr.rel (0) target = $region45
    $region44: #{tpu_custom_call.1} parent=1 // pred_region
      %s392 = ssub.s32 16, 16
      %393 = vsyncadd [#allocation10], %s392
      %s395 = sshll.u32 [#allocation9], 4
      %s396 = int_to_ptr.vmem [resolvable:$true] %s395
      %398 = dma.vmem_to_hbm [thread:$0]  %s396, 16, %s7, [#allocation10]
    $region45: #{tpu_custom_call.1} parent=1 // pred_fallthru
      _
    // Predicated region
    $region46: #{tpu_custom_call.1} parent=1 // pred_check
      _
    $region47: #{tpu_custom_call.1} parent=1 // pred_check_branch
      %400 = sbr.rel (0) target = $region49
    $region48: #{tpu_custom_call.1} parent=1 // pred_region
      %401 = dma.done [#allocation4], 16
    $region49: #{tpu_custom_call.1} parent=1 // pred_fallthru
      _
    // Predicated region
    $region50: #{tpu_custom_call.1} parent=1 // pred_check
      _
    $region51: #{tpu_custom_call.1} parent=1 // pred_check_branch
      %403 = sbr.rel (0) target = $region53
    $region52: #{tpu_custom_call.1} parent=1 // pred_region
      %404 = dma.done [#allocation10], 16
    $region53: #{tpu_custom_call.1} parent=1 // pred_fallthru
      _
    %405 = vsyncpa [#allocation3], 1
    %406 = vsyncpa [#allocation6], 1
    %407 = vsyncpa [#allocation4], 1
    %408 = vsyncpa [#allocation10], 1

</llo_original>
